<compile_context>
chip_gen: v5e
topology: v5e:2x2
jax: 0.10.0
libtpu: 0.0.40
codegen_flags: <defaults>
</compile_context>

<pallas_src>
import jax
import jax.numpy as jnp
from jax.experimental import pallas as pl
from jax.experimental.pallas import tpu as pltpu


def _round_up(x, m):
    return (x + m - 1) // m * m


def _pick_b_blk(Bp):
    """Split the (padded) batch into two multiple-of-8 blocks when possible so the
    'parallel' batch axis can feed both TensorCores on v7x."""
    if Bp >= 16 and Bp % 16 == 0:
        return Bp // 2
    return Bp


def _pick_t_blk(T, b_blk, Hp, max_blk=32, vmem_budget=8 << 20):
    """Largest divisor of T that is <= max_blk and whose double-buffered gx chunk fits
    the VMEM budget (timesteps per grid step)."""
    bytes_per_t = b_blk * 3 * Hp * 4            # f32 gx row per timestep
    cap = max(1, vmem_budget // (2 * bytes_per_t))
    hi = min(T, max_blk, cap)
    for cand in range(hi, 0, -1):
        if T % cand == 0:
            return cand
    return 1


def gru_recurrent_kernel(gx_ref, whh_ref, bhn_ref, h_ref):
    """One grid step == one (batch block, T_BLK-timestep chunk).

    gx_ref : (T_BLK, B_BLK, 3H)  precomputed x@W_ih + b_ih (+ b_hr, b_hz folded in), time-major
    whh_ref: (H, 3H)             gate-fused hidden-to-hidden weights (gate order r, z, n)
    bhn_ref: (1, H)              hidden bias of the n gate (scaled by r -> cannot be folded)
    h_ref  : (B_BLK, H)          output block; constant block index across the time axis keeps
                                 it resident in VMEM, so it doubles as the recurrent carry.
    """
    @pl.when(pl.program_id(1) == 0)
    def _init():
        h_ref[...] = jnp.zeros_like(h_ref)

    t_blk = gx_ref.shape[0]
    B = h_ref.shape[0]
    H = h_ref.shape[-1]

    # Loop-invariant operands: load / broadcast ONCE (outside the unrolled loop).
    whh = whh_ref[...]                                       # (H, 3H), single-buffered
    bhn = jnp.broadcast_to(bhn_ref[...], (B, H))             # (B, H)

    def step(k, h):
        gx = gx_ref[k]                                                   # (B, 3H), dense tile
        gh = jnp.dot(h, whh, preferred_element_type=jnp.float32)        # (B, 3H), one MXU call
        rz = jax.nn.sigmoid(gx[:, :2 * H] + gh[:, :2 * H])              # r,z in one EUP slab
        r = rz[:, :H]
        z = rz[:, H:]
        n = jnp.tanh(gx[:, 2 * H:] + r * (gh[:, 2 * H:] + bhn))
        return n + z * (h - n)                                           # == (1-z)*n + z*h

    h = jax.lax.fori_loop(0, t_blk, step, h_ref[...], unroll=True)
    h_ref[...] = h


@jax.jit
def gru_forward(x, wih, whh, bih, bhh, wfc, bfc):
    """x: (B, T, D) f32.  Fused-gate params: wih (D,3H), whh (H,3H), bih/bhh (3H,),
    wfc (H,O), bfc (O,).  Returns (fc_out (B,O), h (1,B,H)) like the PyTorch module."""
    B, T, D = x.shape
    H = whh.shape[0]
    O = wfc.shape[1]

    # ---- pad to vreg-friendly shapes: B -> mult of 8 sublanes, H/O -> mult of 128 lanes ----
    Bp = max(_round_up(B, 8), 8)
    Hp = _round_up(H, 128)
    Op = _round_up(O, 128)

    x_p = jnp.pad(x, ((0, Bp - B), (0, 0), (0, 0)))
    wih_p = jnp.pad(wih.reshape(D, 3, H), ((0, 0), (0, 0), (0, Hp - H)))          # (D,3,Hp)
    whh_p = jnp.pad(whh.reshape(H, 3, H),
                    ((0, Hp - H), (0, 0), (0, Hp - H))).reshape(Hp, 3 * Hp)       # (Hp,3Hp)
    bih_p = jnp.pad(bih.reshape(3, H), ((0, 0), (0, Hp - H)))                     # (3,Hp)
    bhh_p = jnp.pad(bhh.reshape(3, H), ((0, 0), (0, Hp - H)))                     # (3,Hp)
    wfc_p = jnp.pad(wfc, ((0, Hp - H), (0, Op - O)))
    bfc_p = jnp.pad(bfc, ((0, Op - O),))

    # ---- hoist the input projection out of the recurrence: one big matmul for all T ----
    # Fold b_ih (all gates) plus b_hr, b_hz into the precomputed gx; b_hn must stay separate
    # because PyTorch applies it inside  r * (h @ W_hn + b_hn).
    b_pre = (bih_p + bhh_p.at[2].set(0.0)).reshape(3 * Hp)
    b_hn = bhh_p[2].reshape(1, Hp)
    gx = jnp.einsum('btd,dgh->tbgh', x_p, wih_p,
                    preferred_element_type=jnp.float32).reshape(T, Bp, 3 * Hp)
    gx = gx + b_pre[None, None, :]                                      # (T, Bp, 3Hp) time-major

    b_blk = _pick_b_blk(Bp)
    n_b = Bp // b_blk
    t_blk = _pick_t_blk(T, b_blk, Hp)
    n_chunks = T // t_blk

    h_last = pl.pallas_call(
        gru_recurrent_kernel,
        out_shape=jax.ShapeDtypeStruct((Bp, Hp), jnp.float32),
        grid_spec=pltpu.PrefetchScalarGridSpec(
            num_scalar_prefetch=0,
            grid=(n_b, n_chunks),
            in_specs=[
                # time-blocked gx chunks walk the sequence for each batch block
                pl.BlockSpec((t_blk, b_blk, 3 * Hp), lambda b, c: (c, b, 0)),
                # loop-invariant operands: constant index map, single-buffered
                pl.BlockSpec((Hp, 3 * Hp), lambda b, c: (0, 0),
                             pipeline_mode=pl.Buffered(1)),
                pl.BlockSpec((1, Hp), lambda b, c: (0, 0),
                             pipeline_mode=pl.Buffered(1)),
            ],
            out_specs=pl.BlockSpec((b_blk, Hp), lambda b, c: (b, 0)),
        ),
        compiler_params=pltpu.CompilerParams(
            # batch blocks are independent (megacore-shardable); recurrence over time must
            # stay sequential and keeps the output block resident as the carry.
            dimension_semantics=("parallel", "arbitrary")),
    )(gx, whh_p, b_hn)

    # ---- final fc(relu(h_T)): used once, tiny -> plain XLA outside the recurrent kernel ----
    out_p = jnp.maximum(h_last, 0.0) @ wfc_p + bfc_p[None, :]

    out = out_p[:B, :O]
    h = h_last[:B, :H][None]        # (num_layers * num_directions = 1, B, H) like PyTorch
    return out, h


def gru_reference(x, wih, whh, bih, bhh, wfc, bfc):
    """Pure-JAX reference (lax.scan) for correctness checking (same fused-gate layout)."""
    B, T, D = x.shape
    H = whh.shape[0]

    def step(h, x_t):
        gx = x_t @ wih + bih
        gh = h @ whh + bhh
        r = jax.nn.sigmoid(gx[:, :H] + gh[:, :H])
        z = jax.nn.sigmoid(gx[:, H:2 * H] + gh[:, H:2 * H])
        n = jnp.tanh(gx[:, 2 * H:] + r * gh[:, 2 * H:])
        h_new = (1.0 - z) * n + z * h
        return h_new, None

    h0 = jnp.zeros((B, H), jnp.float32)
    h_T, _ = jax.lax.scan(step, h0, jnp.transpose(x, (1, 0, 2)))
    out = jnp.maximum(h_T, 0.0) @ wfc + bfc
    return out, h_T[None]


def init_params(key, input_dim, hidden_dim, output_dim):
    """Deterministic init mirroring PyTorch (uniform(-1/sqrt(H), 1/sqrt(H))), gate-fused layout."""
    k = 1.0 / jnp.sqrt(hidden_dim)
    keys = jax.random.split(key, 6)
    wih = jax.random.uniform(keys[0], (input_dim, 3 * hidden_dim), jnp.float32, -k, k)
    whh = jax.random.uniform(keys[1], (hidden_dim, 3 * hidden_dim), jnp.float32, -k, k)
    bih = jax.random.uniform(keys[2], (3 * hidden_dim,), jnp.float32, -k, k)
    bhh = jax.random.uniform(keys[3], (3 * hidden_dim,), jnp.float32, -k, k)
    wfc = jax.random.uniform(keys[4], (hidden_dim, output_dim), jnp.float32, -k, k)
    bfc = jax.random.uniform(keys[5], (output_dim,), jnp.float32, -k, k)
    return wih, whh, bih, bhh, wfc, bfc


if __name__ == "__main__":
    B, T, D, H, O = 2, 8, 16, 32, 4

    key = jax.random.PRNGKey(0)
    k_x, k_p = jax.random.split(key)
    x = jax.random.normal(k_x, (B, T, D), jnp.float32)
    params = init_params(k_p, D, H, O)

    out, h = gru_forward(x, *params)
    jax.block_until_ready((out, h))

    out_ref, h_ref = gru_reference(x, *params)
    assert out.shape == (B, O) and h.shape == (1, B, H)
    assert jnp.allclose(out, out_ref, atol=1e-4, rtol=1e-4)
    assert jnp.allclose(h, h_ref, atol=1e-4, rtol=1e-4)

    print("KERNEL_OK")
</pallas_src>

<mosaic_0001>
module attributes {stable_mosaic.version = 11 : i64} {
  func.func @gru_recurrent_kernel(%arg0: i32, %arg1: i32, %arg2: memref<8x8x384xf32, #tpu.memory_space<vmem>>, %arg3: memref<128x384xf32, #tpu.memory_space<vmem>>, %arg4: memref<1x128xf32, #tpu.memory_space<vmem>>, %arg5: memref<8x128xf32, #tpu.memory_space<vmem>>) attributes {dimension_semantics = [#tpu.dimension_semantics<parallel>, #tpu.dimension_semantics<arbitrary>], iteration_bounds = array<i64: 1, 1>, scalar_prefetch = 0 : i64, scratch_operands = 0 : i64, tpu.core_type = #tpu.core_type<tc>, window_params = [{transform_indices = @transform_0, window_bounds = array<i64: 8, 8, 384>}, {pipeline_mode = #tpu.pipeline_mode<synchronous>, transform_indices = @transform_1, window_bounds = array<i64: 128, 384>}, {pipeline_mode = #tpu.pipeline_mode<synchronous>, transform_indices = @transform_2, window_bounds = array<i64: 1, 128>}, {transform_indices = @transform_3, window_bounds = array<i64: 8, 128>}]} {
    %c0_i32 = arith.constant 0 : i32
    %0 = arith.cmpi eq, %arg1, %c0_i32 : i32
    %1 = arith.extui %0 : i1 to i32
    %c0_i32_0 = arith.constant 0 : i32
    %2 = arith.cmpi ne, %1, %c0_i32_0 : i32
    scf.if %2 {
      %cst_40 = arith.constant 0.000000e+00 : f32
      %193 = vector.broadcast %cst_40 : f32 to vector<8x128xf32>
      %c0_41 = arith.constant 0 : index
      %c0_42 = arith.constant 0 : index
      %194 = vector.load %arg5[%c0_41, %c0_42] : memref<8x128xf32, #tpu.memory_space<vmem>>, vector<8x128xf32>
      tpu.vector_store %arg5[%c0_41, %c0_42], %193 {strides = array<i32>} : memref<8x128xf32, #tpu.memory_space<vmem>>, vector<8x128xf32>,
    } else {
    }
    %c0 = arith.constant 0 : index
    %c0_1 = arith.constant 0 : index
    %3 = vector.load %arg3[%c0, %c0_1] : memref<128x384xf32, #tpu.memory_space<vmem>>, vector<128x384xf32>
    %c0_2 = arith.constant 0 : index
    %c0_3 = arith.constant 0 : index
    %4 = vector.load %arg4[%c0_2, %c0_3] : memref<1x128xf32, #tpu.memory_space<vmem>>, vector<1x128xf32>
    %5 = vector.shape_cast %4 : vector<1x128xf32> to vector<1x128xf32>
    %6 = vector.broadcast %5 : vector<1x128xf32> to vector<8x128xf32>
    %c0_4 = arith.constant 0 : index
    %c0_5 = arith.constant 0 : index
    %7 = vector.load %arg5[%c0_4, %c0_5] : memref<8x128xf32, #tpu.memory_space<vmem>>, vector<8x128xf32>
    %c0_i32_6 = arith.constant 0 : i32
    %8 = arith.index_cast %c0_i32_6 : i32 to index
    %c0_7 = arith.constant 0 : index
    %c0_8 = arith.constant 0 : index
    %9 = vector.load %arg2[%8, %c0_7, %c0_8] : memref<8x8x384xf32, #tpu.memory_space<vmem>>, vector<1x8x384xf32>
    %10 = vector.shape_cast %9 : vector<1x8x384xf32> to vector<8x384xf32>
    %cst = arith.constant dense<0.000000e+00> : vector<8x384xf32>
    %11 = tpu.matmul %7, %3, %cst {dimension_numbers = #tpu.dot_dimension_numbers<[1], [0], [0], [1], [0, 0, 1, 1], [], []>} : vector<8x128xf32>, vector<128x384xf32>, vector<8x384xf32> -> vector<8x384xf32>
    %12 = vector.extract_strided_slice %10 {offsets = [0, 0], sizes = [8, 256], strides = [1, 1]} : vector<8x384xf32> to vector<8x256xf32>
    %13 = vector.extract_strided_slice %11 {offsets = [0, 0], sizes = [8, 256], strides = [1, 1]} : vector<8x384xf32> to vector<8x256xf32>
    %14 = arith.addf %12, %13 : vector<8x256xf32>
    %15 = arith.negf %14 : vector<8x256xf32>
    %16 = math.exp %15 : vector<8x256xf32>
    %cst_9 = arith.constant 1.000000e+00 : f32
    %17 = vector.broadcast %cst_9 : f32 to vector<8x256xf32>
    %18 = arith.addf %17, %16 : vector<8x256xf32>
    %19 = arith.divf %17, %18 : vector<8x256xf32>
    %20 = vector.extract_strided_slice %19 {offsets = [0, 0], sizes = [8, 128], strides = [1, 1]} : vector<8x256xf32> to vector<8x128xf32>
    %21 = vector.extract_strided_slice %19 {offsets = [0, 128], sizes = [8, 128], strides = [1, 1]} : vector<8x256xf32> to vector<8x128xf32>
    %22 = vector.extract_strided_slice %10 {offsets = [0, 256], sizes = [8, 128], strides = [1, 1]} : vector<8x384xf32> to vector<8x128xf32>
    %23 = vector.extract_strided_slice %11 {offsets = [0, 256], sizes = [8, 128], strides = [1, 1]} : vector<8x384xf32> to vector<8x128xf32>
    %24 = arith.addf %23, %6 : vector<8x128xf32>
    %25 = arith.mulf %20, %24 : vector<8x128xf32>
    %26 = arith.addf %22, %25 : vector<8x128xf32>
    %27 = math.tanh %26 : vector<8x128xf32>
    %28 = arith.subf %7, %27 : vector<8x128xf32>
    %29 = arith.mulf %21, %28 : vector<8x128xf32>
    %30 = arith.addf %27, %29 : vector<8x128xf32>
    %c1_i32 = arith.constant 1 : i32
    %31 = arith.index_cast %c1_i32 : i32 to index
    %c0_10 = arith.constant 0 : index
    %c0_11 = arith.constant 0 : index
    %32 = vector.load %arg2[%31, %c0_10, %c0_11] : memref<8x8x384xf32, #tpu.memory_space<vmem>>, vector<1x8x384xf32>
    %33 = vector.shape_cast %32 : vector<1x8x384xf32> to vector<8x384xf32>
    %cst_12 = arith.constant dense<0.000000e+00> : vector<8x384xf32>
    %34 = tpu.matmul %30, %3, %cst_12 {dimension_numbers = #tpu.dot_dimension_numbers<[1], [0], [0], [1], [0, 0, 1, 1], [], []>} : vector<8x128xf32>, vector<128x384xf32>, vector<8x384xf32> -> vector<8x384xf32>
    %35 = vector.extract_strided_slice %33 {offsets = [0, 0], sizes = [8, 256], strides = [1, 1]} : vector<8x384xf32> to vector<8x256xf32>
    %36 = vector.extract_strided_slice %34 {offsets = [0, 0], sizes = [8, 256], strides = [1, 1]} : vector<8x384xf32> to vector<8x256xf32>
    %37 = arith.addf %35, %36 : vector<8x256xf32>
    %38 = arith.negf %37 : vector<8x256xf32>
    %39 = math.exp %38 : vector<8x256xf32>
    %cst_13 = arith.constant 1.000000e+00 : f32
    %40 = vector.broadcast %cst_13 : f32 to vector<8x256xf32>
    %41 = arith.addf %40, %39 : vector<8x256xf32>
    %42 = arith.divf %40, %41 : vector<8x256xf32>
    %43 = vector.extract_strided_slice %42 {offsets = [0, 0], sizes = [8, 128], strides = [1, 1]} : vector<8x256xf32> to vector<8x128xf32>
    %44 = vector.extract_strided_slice %42 {offsets = [0, 128], sizes = [8, 128], strides = [1, 1]} : vector<8x256xf32> to vector<8x128xf32>
    %45 = vector.extract_strided_slice %33 {offsets = [0, 256], sizes = [8, 128], strides = [1, 1]} : vector<8x384xf32> to vector<8x128xf32>
    %46 = vector.extract_strided_slice %34 {offsets = [0, 256], sizes = [8, 128], strides = [1, 1]} : vector<8x384xf32> to vector<8x128xf32>
    %47 = arith.addf %46, %6 : vector<8x128xf32>
    %48 = arith.mulf %43, %47 : vector<8x128xf32>
    %49 = arith.addf %45, %48 : vector<8x128xf32>
    %50 = math.tanh %49 : vector<8x128xf32>
    %51 = arith.subf %30, %50 : vector<8x128xf32>
    %52 = arith.mulf %44, %51 : vector<8x128xf32>
    %53 = arith.addf %50, %52 : vector<8x128xf32>
    %c2_i32 = arith.constant 2 : i32
    %54 = arith.index_cast %c2_i32 : i32 to index
    %c0_14 = arith.constant 0 : index
    %c0_15 = arith.constant 0 : index
    %55 = vector.load %arg2[%54, %c0_14, %c0_15] : memref<8x8x384xf32, #tpu.memory_space<vmem>>, vector<1x8x384xf32>
    %56 = vector.shape_cast %55 : vector<1x8x384xf32> to vector<8x384xf32>
    %cst_16 = arith.constant dense<0.000000e+00> : vector<8x384xf32>
    %57 = tpu.matmul %53, %3, %cst_16 {dimension_numbers = #tpu.dot_dimension_numbers<[1], [0], [0], [1], [0, 0, 1, 1], [], []>} : vector<8x128xf32>, vector<128x384xf32>, vector<8x384xf32> -> vector<8x384xf32>
    %58 = vector.extract_strided_slice %56 {offsets = [0, 0], sizes = [8, 256], strides = [1, 1]} : vector<8x384xf32> to vector<8x256xf32>
    %59 = vector.extract_strided_slice %57 {offsets = [0, 0], sizes = [8, 256], strides = [1, 1]} : vector<8x384xf32> to vector<8x256xf32>
    %60 = arith.addf %58, %59 : vector<8x256xf32>
    %61 = arith.negf %60 : vector<8x256xf32>
    %62 = math.exp %61 : vector<8x256xf32>
    %cst_17 = arith.constant 1.000000e+00 : f32
    %63 = vector.broadcast %cst_17 : f32 to vector<8x256xf32>
    %64 = arith.addf %63, %62 : vector<8x256xf32>
    %65 = arith.divf %63, %64 : vector<8x256xf32>
    %66 = vector.extract_strided_slice %65 {offsets = [0, 0], sizes = [8, 128], strides = [1, 1]} : vector<8x256xf32> to vector<8x128xf32>
    %67 = vector.extract_strided_slice %65 {offsets = [0, 128], sizes = [8, 128], strides = [1, 1]} : vector<8x256xf32> to vector<8x128xf32>
    %68 = vector.extract_strided_slice %56 {offsets = [0, 256], sizes = [8, 128], strides = [1, 1]} : vector<8x384xf32> to vector<8x128xf32>
    %69 = vector.extract_strided_slice %57 {offsets = [0, 256], sizes = [8, 128], strides = [1, 1]} : vector<8x384xf32> to vector<8x128xf32>
    %70 = arith.addf %69, %6 : vector<8x128xf32>
    %71 = arith.mulf %66, %70 : vector<8x128xf32>
    %72 = arith.addf %68, %71 : vector<8x128xf32>
    %73 = math.tanh %72 : vector<8x128xf32>
    %74 = arith.subf %53, %73 : vector<8x128xf32>
    %75 = arith.mulf %67, %74 : vector<8x128xf32>
    %76 = arith.addf %73, %75 : vector<8x128xf32>
    %c3_i32 = arith.constant 3 : i32
    %77 = arith.index_cast %c3_i32 : i32 to index
    %c0_18 = arith.constant 0 : index
    %c0_19 = arith.constant 0 : index
    %78 = vector.load %arg2[%77, %c0_18, %c0_19] : memref<8x8x384xf32, #tpu.memory_space<vmem>>, vector<1x8x384xf32>
    %79 = vector.shape_cast %78 : vector<1x8x384xf32> to vector<8x384xf32>
    %cst_20 = arith.constant dense<0.000000e+00> : vector<8x384xf32>
    %80 = tpu.matmul %76, %3, %cst_20 {dimension_numbers = #tpu.dot_dimension_numbers<[1], [0], [0], [1], [0, 0, 1, 1], [], []>} : vector<8x128xf32>, vector<128x384xf32>, vector<8x384xf32> -> vector<8x384xf32>
    %81 = vector.extract_strided_slice %79 {offsets = [0, 0], sizes = [8, 256], strides = [1, 1]} : vector<8x384xf32> to vector<8x256xf32>
    %82 = vector.extract_strided_slice %80 {offsets = [0, 0], sizes = [8, 256], strides = [1, 1]} : vector<8x384xf32> to vector<8x256xf32>
    %83 = arith.addf %81, %82 : vector<8x256xf32>
    %84 = arith.negf %83 : vector<8x256xf32>
    %85 = math.exp %84 : vector<8x256xf32>
    %cst_21 = arith.constant 1.000000e+00 : f32
    %86 = vector.broadcast %cst_21 : f32 to vector<8x256xf32>
    %87 = arith.addf %86, %85 : vector<8x256xf32>
    %88 = arith.divf %86, %87 : vector<8x256xf32>
    %89 = vector.extract_strided_slice %88 {offsets = [0, 0], sizes = [8, 128], strides = [1, 1]} : vector<8x256xf32> to vector<8x128xf32>
    %90 = vector.extract_strided_slice %88 {offsets = [0, 128], sizes = [8, 128], strides = [1, 1]} : vector<8x256xf32> to vector<8x128xf32>
    %91 = vector.extract_strided_slice %79 {offsets = [0, 256], sizes = [8, 128], strides = [1, 1]} : vector<8x384xf32> to vector<8x128xf32>
    %92 = vector.extract_strided_slice %80 {offsets = [0, 256], sizes = [8, 128], strides = [1, 1]} : vector<8x384xf32> to vector<8x128xf32>
    %93 = arith.addf %92, %6 : vector<8x128xf32>
    %94 = arith.mulf %89, %93 : vector<8x128xf32>
    %95 = arith.addf %91, %94 : vector<8x128xf32>
    %96 = math.tanh %95 : vector<8x128xf32>
    %97 = arith.subf %76, %96 : vector<8x128xf32>
    %98 = arith.mulf %90, %97 : vector<8x128xf32>
    %99 = arith.addf %96, %98 : vector<8x128xf32>
    %c4_i32 = arith.constant 4 : i32
    %100 = arith.index_cast %c4_i32 : i32 to index
    %c0_22 = arith.constant 0 : index
    %c0_23 = arith.constant 0 : index
    %101 = vector.load %arg2[%100, %c0_22, %c0_23] : memref<8x8x384xf32, #tpu.memory_space<vmem>>, vector<1x8x384xf32>
    %102 = vector.shape_cast %101 : vector<1x8x384xf32> to vector<8x384xf32>
    %cst_24 = arith.constant dense<0.000000e+00> : vector<8x384xf32>
    %103 = tpu.matmul %99, %3, %cst_24 {dimension_numbers = #tpu.dot_dimension_numbers<[1], [0], [0], [1], [0, 0, 1, 1], [], []>} : vector<8x128xf32>, vector<128x384xf32>, vector<8x384xf32> -> vector<8x384xf32>
    %104 = vector.extract_strided_slice %102 {offsets = [0, 0], sizes = [8, 256], strides = [1, 1]} : vector<8x384xf32> to vector<8x256xf32>
    %105 = vector.extract_strided_slice %103 {offsets = [0, 0], sizes = [8, 256], strides = [1, 1]} : vector<8x384xf32> to vector<8x256xf32>
    %106 = arith.addf %104, %105 : vector<8x256xf32>
    %107 = arith.negf %106 : vector<8x256xf32>
    %108 = math.exp %107 : vector<8x256xf32>
    %cst_25 = arith.constant 1.000000e+00 : f32
    %109 = vector.broadcast %cst_25 : f32 to vector<8x256xf32>
    %110 = arith.addf %109, %108 : vector<8x256xf32>
    %111 = arith.divf %109, %110 : vector<8x256xf32>
    %112 = vector.extract_strided_slice %111 {offsets = [0, 0], sizes = [8, 128], strides = [1, 1]} : vector<8x256xf32> to vector<8x128xf32>
    %113 = vector.extract_strided_slice %111 {offsets = [0, 128], sizes = [8, 128], strides = [1, 1]} : vector<8x256xf32> to vector<8x128xf32>
    %114 = vector.extract_strided_slice %102 {offsets = [0, 256], sizes = [8, 128], strides = [1, 1]} : vector<8x384xf32> to vector<8x128xf32>
    %115 = vector.extract_strided_slice %103 {offsets = [0, 256], sizes = [8, 128], strides = [1, 1]} : vector<8x384xf32> to vector<8x128xf32>
    %116 = arith.addf %115, %6 : vector<8x128xf32>
    %117 = arith.mulf %112, %116 : vector<8x128xf32>
    %118 = arith.addf %114, %117 : vector<8x128xf32>
    %119 = math.tanh %118 : vector<8x128xf32>
    %120 = arith.subf %99, %119 : vector<8x128xf32>
    %121 = arith.mulf %113, %120 : vector<8x128xf32>
    %122 = arith.addf %119, %121 : vector<8x128xf32>
    %c5_i32 = arith.constant 5 : i32
    %123 = arith.index_cast %c5_i32 : i32 to index
    %c0_26 = arith.constant 0 : index
    %c0_27 = arith.constant 0 : index
    %124 = vector.load %arg2[%123, %c0_26, %c0_27] : memref<8x8x384xf32, #tpu.memory_space<vmem>>, vector<1x8x384xf32>
    %125 = vector.shape_cast %124 : vector<1x8x384xf32> to vector<8x384xf32>
    %cst_28 = arith.constant dense<0.000000e+00> : vector<8x384xf32>
    %126 = tpu.matmul %122, %3, %cst_28 {dimension_numbers = #tpu.dot_dimension_numbers<[1], [0], [0], [1], [0, 0, 1, 1], [], []>} : vector<8x128xf32>, vector<128x384xf32>, vector<8x384xf32> -> vector<8x384xf32>
    %127 = vector.extract_strided_slice %125 {offsets = [0, 0], sizes = [8, 256], strides = [1, 1]} : vector<8x384xf32> to vector<8x256xf32>
    %128 = vector.extract_strided_slice %126 {offsets = [0, 0], sizes = [8, 256], strides = [1, 1]} : vector<8x384xf32> to vector<8x256xf32>
    %129 = arith.addf %127, %128 : vector<8x256xf32>
    %130 = arith.negf %129 : vector<8x256xf32>
    %131 = math.exp %130 : vector<8x256xf32>
    %cst_29 = arith.constant 1.000000e+00 : f32
    %132 = vector.broadcast %cst_29 : f32 to vector<8x256xf32>
    %133 = arith.addf %132, %131 : vector<8x256xf32>
    %134 = arith.divf %132, %133 : vector<8x256xf32>
    %135 = vector.extract_strided_slice %134 {offsets = [0, 0], sizes = [8, 128], strides = [1, 1]} : vector<8x256xf32> to vector<8x128xf32>
    %136 = vector.extract_strided_slice %134 {offsets = [0, 128], sizes = [8, 128], strides = [1, 1]} : vector<8x256xf32> to vector<8x128xf32>
    %137 = vector.extract_strided_slice %125 {offsets = [0, 256], sizes = [8, 128], strides = [1, 1]} : vector<8x384xf32> to vector<8x128xf32>
    %138 = vector.extract_strided_slice %126 {offsets = [0, 256], sizes = [8, 128], strides = [1, 1]} : vector<8x384xf32> to vector<8x128xf32>
    %139 = arith.addf %138, %6 : vector<8x128xf32>
    %140 = arith.mulf %135, %139 : vector<8x128xf32>
    %141 = arith.addf %137, %140 : vector<8x128xf32>
    %142 = math.tanh %141 : vector<8x128xf32>
    %143 = arith.subf %122, %142 : vector<8x128xf32>
    %144 = arith.mulf %136, %143 : vector<8x128xf32>
    %145 = arith.addf %142, %144 : vector<8x128xf32>
    %c6_i32 = arith.constant 6 : i32
    %146 = arith.index_cast %c6_i32 : i32 to index
    %c0_30 = arith.constant 0 : index
    %c0_31 = arith.constant 0 : index
    %147 = vector.load %arg2[%146, %c0_30, %c0_31] : memref<8x8x384xf32, #tpu.memory_space<vmem>>, vector<1x8x384xf32>
    %148 = vector.shape_cast %147 : vector<1x8x384xf32> to vector<8x384xf32>
    %cst_32 = arith.constant dense<0.000000e+00> : vector<8x384xf32>
    %149 = tpu.matmul %145, %3, %cst_32 {dimension_numbers = #tpu.dot_dimension_numbers<[1], [0], [0], [1], [0, 0, 1, 1], [], []>} : vector<8x128xf32>, vector<128x384xf32>, vector<8x384xf32> -> vector<8x384xf32>
    %150 = vector.extract_strided_slice %148 {offsets = [0, 0], sizes = [8, 256], strides = [1, 1]} : vector<8x384xf32> to vector<8x256xf32>
    %151 = vector.extract_strided_slice %149 {offsets = [0, 0], sizes = [8, 256], strides = [1, 1]} : vector<8x384xf32> to vector<8x256xf32>
    %152 = arith.addf %150, %151 : vector<8x256xf32>
    %153 = arith.negf %152 : vector<8x256xf32>
    %154 = math.exp %153 : vector<8x256xf32>
    %cst_33 = arith.constant 1.000000e+00 : f32
    %155 = vector.broadcast %cst_33 : f32 to vector<8x256xf32>
    %156 = arith.addf %155, %154 : vector<8x256xf32>
    %157 = arith.divf %155, %156 : vector<8x256xf32>
    %158 = vector.extract_strided_slice %157 {offsets = [0, 0], sizes = [8, 128], strides = [1, 1]} : vector<8x256xf32> to vector<8x128xf32>
    %159 = vector.extract_strided_slice %157 {offsets = [0, 128], sizes = [8, 128], strides = [1, 1]} : vector<8x256xf32> to vector<8x128xf32>
    %160 = vector.extract_strided_slice %148 {offsets = [0, 256], sizes = [8, 128], strides = [1, 1]} : vector<8x384xf32> to vector<8x128xf32>
    %161 = vector.extract_strided_slice %149 {offsets = [0, 256], sizes = [8, 128], strides = [1, 1]} : vector<8x384xf32> to vector<8x128xf32>
    %162 = arith.addf %161, %6 : vector<8x128xf32>
    %163 = arith.mulf %158, %162 : vector<8x128xf32>
    %164 = arith.addf %160, %163 : vector<8x128xf32>
    %165 = math.tanh %164 : vector<8x128xf32>
    %166 = arith.subf %145, %165 : vector<8x128xf32>
    %167 = arith.mulf %159, %166 : vector<8x128xf32>
    %168 = arith.addf %165, %167 : vector<8x128xf32>
    %c7_i32 = arith.constant 7 : i32
    %169 = arith.index_cast %c7_i32 : i32 to index
    %c0_34 = arith.constant 0 : index
    %c0_35 = arith.constant 0 : index
    %170 = vector.load %arg2[%169, %c0_34, %c0_35] : memref<8x8x384xf32, #tpu.memory_space<vmem>>, vector<1x8x384xf32>
    %171 = vector.shape_cast %170 : vector<1x8x384xf32> to vector<8x384xf32>
    %cst_36 = arith.constant dense<0.000000e+00> : vector<8x384xf32>
    %172 = tpu.matmul %168, %3, %cst_36 {dimension_numbers = #tpu.dot_dimension_numbers<[1], [0], [0], [1], [0, 0, 1, 1], [], []>} : vector<8x128xf32>, vector<128x384xf32>, vector<8x384xf32> -> vector<8x384xf32>
    %173 = vector.extract_strided_slice %171 {offsets = [0, 0], sizes = [8, 256], strides = [1, 1]} : vector<8x384xf32> to vector<8x256xf32>
    %174 = vector.extract_strided_slice %172 {offsets = [0, 0], sizes = [8, 256], strides = [1, 1]} : vector<8x384xf32> to vector<8x256xf32>
    %175 = arith.addf %173, %174 : vector<8x256xf32>
    %176 = arith.negf %175 : vector<8x256xf32>
    %177 = math.exp %176 : vector<8x256xf32>
    %cst_37 = arith.constant 1.000000e+00 : f32
    %178 = vector.broadcast %cst_37 : f32 to vector<8x256xf32>
    %179 = arith.addf %178, %177 : vector<8x256xf32>
    %180 = arith.divf %178, %179 : vector<8x256xf32>
    %181 = vector.extract_strided_slice %180 {offsets = [0, 0], sizes = [8, 128], strides = [1, 1]} : vector<8x256xf32> to vector<8x128xf32>
    %182 = vector.extract_strided_slice %180 {offsets = [0, 128], sizes = [8, 128], strides = [1, 1]} : vector<8x256xf32> to vector<8x128xf32>
    %183 = vector.extract_strided_slice %171 {offsets = [0, 256], sizes = [8, 128], strides = [1, 1]} : vector<8x384xf32> to vector<8x128xf32>
    %184 = vector.extract_strided_slice %172 {offsets = [0, 256], sizes = [8, 128], strides = [1, 1]} : vector<8x384xf32> to vector<8x128xf32>
    %185 = arith.addf %184, %6 : vector<8x128xf32>
    %186 = arith.mulf %181, %185 : vector<8x128xf32>
    %187 = arith.addf %183, %186 : vector<8x128xf32>
    %188 = math.tanh %187 : vector<8x128xf32>
    %189 = arith.subf %168, %188 : vector<8x128xf32>
    %190 = arith.mulf %182, %189 : vector<8x128xf32>
    %191 = arith.addf %188, %190 : vector<8x128xf32>
    %c8_i32 = arith.constant 8 : i32
    %c0_38 = arith.constant 0 : index
    %c0_39 = arith.constant 0 : index
    %192 = vector.load %arg5[%c0_38, %c0_39] : memref<8x128xf32, #tpu.memory_space<vmem>>, vector<8x128xf32>
    tpu.vector_store %arg5[%c0_38, %c0_39], %191 {strides = array<i32>} : memref<8x128xf32, #tpu.memory_space<vmem>>, vector<8x128xf32>,
    return
  }
  func.func @transform_0(%arg0: i32, %arg1: i32) -> (i32, i32, i32) {
    %c0_i32 = arith.constant 0 : i32
    %c0_i32_0 = arith.constant 0 : i32
    return %arg1, %arg0, %c0_i32 : i32, i32, i32
  }
  func.func @transform_1(%arg0: i32, %arg1: i32) -> (i32, i32) {
    %c0_i32 = arith.constant 0 : i32
    %c0_i32_0 = arith.constant 0 : i32
    %c0_i32_1 = arith.constant 0 : i32
    return %c0_i32, %c0_i32_0 : i32, i32
  }
  func.func @transform_2(%arg0: i32, %arg1: i32) -> (i32, i32) {
    %c0_i32 = arith.constant 0 : i32
    %c0_i32_0 = arith.constant 0 : i32
    %c0_i32_1 = arith.constant 0 : i32
    return %c0_i32, %c0_i32_0 : i32, i32
  }
  func.func @transform_3(%arg0: i32, %arg1: i32) -> (i32, i32) {
    %c0_i32 = arith.constant 0 : i32
    %c0_i32_0 = arith.constant 0 : i32
    return %arg0, %c0_i32 : i32, i32
  }
}

</mosaic_0001>

<llo_original>
// kernel: gru_forward.1
$region0: #{gru_forward.1}
  #allocation0 [shape = 'u32[]', space=smem, size = 0x4, offset = 0x4, fixed_abs, tag = 'smem constant byte address 0x4 - core index']
  #allocation1 [shape = 'u32[72,128]{1,0:T(1,128)}', space=vmem, size = 0x9000, scoped, tag = 'internal scratch']
  %s0 = inlined_call_operand.vmem [shape: f32[8,8,384], index: 0, kind: input, shape index: {}]
  %s1 = inlined_call_operand.vmem [shape: f32[128,384], index: 1, kind: input, shape index: {}]
  %s2 = inlined_call_operand.vmem [shape: f32[1,128], index: 2, kind: input, shape index: {}]
  %s3 = inlined_call_operand.vmem [shape: f32[8,128], index: 3, kind: output, shape index: {}]
  %s4 = sld [smem:[#allocation0]]
  $region26: #{gru_forward.1} parent=0
    _
  %s6 = ssub.s32 1, %s4
  %s7 = scalar_select 0, %s6, %s4
  // Predicated region
  $region2: #{gru_forward.1} parent=0 // pred_check
    _
  $region3: #{gru_forward.1} parent=0 // pred_check_branch
    %9 = sbr.rel (0) target = $region5
  $region4: #{gru_forward.1} parent=0 // pred_region
    _
  $region5: #{gru_forward.1} parent=0 // pred_fallthru
    _
  // Predicated region
  $region6: #{gru_forward.1} parent=0 // pred_check
    _
  $region7: #{gru_forward.1} parent=0 // pred_check_branch
    %11 = sbr.rel (0) target = $region9
  $region8: #{gru_forward.1} parent=0 // pred_region
    _
  $region9: #{gru_forward.1} parent=0 // pred_fallthru
    _
  // Predicated region
  $region10: #{gru_forward.1} parent=0 // pred_check
    _
  $region11: #{gru_forward.1} parent=0 // pred_check_branch
    %13 = sbr.rel (0) target = $region13
  $region12: #{gru_forward.1} parent=0 // pred_region
    _
  $region13: #{gru_forward.1} parent=0 // pred_fallthru
    _
  %p14 = scmp.eq.s32.totalorder 0, 0
  // Predicated region
  $region14: #{gru_forward.1} parent=0 // pred_check
    %p15 = pneg %p14
  $region15: #{gru_forward.1} parent=0 // pred_check_branch
    %17 = sbr.rel (%p15) target = $region17
  $region16: #{gru_forward.1} parent=0 // pred_region
    %18 = vst [vmem:[%s3] sm:$0xff] 0.0
  $region17: #{gru_forward.1} parent=0 // pred_fallthru
    _
  %v19 = vld [vmem:[%s1] sm:$0xff]
  %v20 = vld [vmem:[%s1 + $0x8] sm:$0xff]
  %v21 = vld [vmem:[%s1 + $0x10] sm:$0xff]
  %v22 = vld [vmem:[%s1 + $0x18] sm:$0xff]
  %v23 = vld [vmem:[%s1 + $0x20] sm:$0xff]
  %v24 = vld [vmem:[%s1 + $0x28] sm:$0xff]
  %v25 = vld [vmem:[%s1 + $0x30] sm:$0xff]
  %v26 = vld [vmem:[%s1 + $0x38] sm:$0xff]
  %v27 = vld [vmem:[%s1 + $0x40] sm:$0xff]
  %v28 = vld [vmem:[%s1 + $0x48] sm:$0xff]
  %v29 = vld [vmem:[%s1 + $0x50] sm:$0xff]
  %v30 = vld [vmem:[%s1 + $0x58] sm:$0xff]
  %v31 = vld [vmem:[%s1 + $0x60] sm:$0xff]
  %v32 = vld [vmem:[%s1 + $0x68] sm:$0xff]
  %v33 = vld [vmem:[%s1 + $0x70] sm:$0xff]
  %v34 = vld [vmem:[%s1 + $0x78] sm:$0xff]
  %v35 = vld [vmem:[%s1 + $0x80] sm:$0xff]
  %v36 = vld [vmem:[%s1 + $0x88] sm:$0xff]
  %v37 = vld [vmem:[%s1 + $0x90] sm:$0xff]
  %v38 = vld [vmem:[%s1 + $0x98] sm:$0xff]
  %v39 = vld [vmem:[%s1 + $0xa0] sm:$0xff]
  %v40 = vld [vmem:[%s1 + $0xa8] sm:$0xff]
  %v41 = vld [vmem:[%s1 + $0xb0] sm:$0xff]
  %v42 = vld [vmem:[%s1 + $0xb8] sm:$0xff]
  %v43 = vld [vmem:[%s1 + $0xc0] sm:$0xff]
  %v44 = vld [vmem:[%s1 + $0xc8] sm:$0xff]
  %v45 = vld [vmem:[%s1 + $0xd0] sm:$0xff]
  %v46 = vld [vmem:[%s1 + $0xd8] sm:$0xff]
  %v47 = vld [vmem:[%s1 + $0xe0] sm:$0xff]
  %v48 = vld [vmem:[%s1 + $0xe8] sm:$0xff]
  %v49 = vld [vmem:[%s1 + $0xf0] sm:$0xff]
  %v50 = vld [vmem:[%s1 + $0xf8] sm:$0xff]
  %v51 = vld [vmem:[%s1 + $0x100] sm:$0xff]
  %v52 = vld [vmem:[%s1 + $0x108] sm:$0xff]
  %v53 = vld [vmem:[%s1 + $0x110] sm:$0xff]
  %v54 = vld [vmem:[%s1 + $0x118] sm:$0xff]
  %v55 = vld [vmem:[%s1 + $0x120] sm:$0xff]
  %v56 = vld [vmem:[%s1 + $0x128] sm:$0xff]
  %v57 = vld [vmem:[%s1 + $0x130] sm:$0xff]
  %v58 = vld [vmem:[%s1 + $0x138] sm:$0xff]
  %v59 = vld [vmem:[%s1 + $0x140] sm:$0xff]
  %v60 = vld [vmem:[%s1 + $0x148] sm:$0xff]
  %v61 = vld [vmem:[%s1 + $0x150] sm:$0xff]
  %v62 = vld [vmem:[%s1 + $0x158] sm:$0xff]
  %v63 = vld [vmem:[%s1 + $0x160] sm:$0xff]
  %v64 = vld [vmem:[%s1 + $0x168] sm:$0xff]
  %v65 = vld [vmem:[%s1 + $0x170] sm:$0xff]
  %v66 = vld [vmem:[%s1 + $0x178] sm:$0xff]
  %v67 = vld [vmem:[%s2] sm:$0x1]
  %v69 = vperm.slane %v67, 0
  %v71 = vld [vmem:[%s3] sm:$0xff]
  %v72 = vld [vmem:[%s0] sm:$0xff]
  %v73 = vld [vmem:[%s0 + $0x8] sm:$0xff]
  %v74 = vld [vmem:[%s0 + $0x10] sm:$0xff]
  %75 = vmatpush.msra.mxu0 %v64
  %76 = vmatpush.msra.mxu0 %v61
  %77 = vmatpush.msra.mxu0 %v58
  %78 = vmatpush.msra.mxu0 %v55
  %79 = vmatpush.msra.mxu0 %v52
  %80 = vmatpush.msra.mxu0 %v49
  %81 = vmatpush.msra.mxu0 %v46
  %82 = vmatpush.msra.mxu0 %v43
  %83 = vmatpush.msra.mxu0 %v40
  %84 = vmatpush.msra.mxu0 %v37
  %85 = vmatpush.msra.mxu0 %v34
  %86 = vmatpush.msra.mxu0 %v31
  %87 = vmatpush.msra.mxu0 %v28
  %88 = vmatpush.msra.mxu0 %v25
  %89 = vmatpush.msra.mxu0 %v22
  %90 = vmatpush.msra.mxu0 %v19
  %91 = vmatmul.f32.gmra.mxu0 %v71
  %v92 = vpop.f32.mrf.mxu0
  %v93 = vadd.f32 0.0, %v92
  %94 = vdwg.mxu0
  %95 = vmatpush.msra.mxu0 %v65
  %96 = vmatpush.msra.mxu0 %v62
  %97 = vmatpush.msra.mxu0 %v59
  %98 = vmatpush.msra.mxu0 %v56
  %99 = vmatpush.msra.mxu0 %v53
  %100 = vmatpush.msra.mxu0 %v50
  %101 = vmatpush.msra.mxu0 %v47
  %102 = vmatpush.msra.mxu0 %v44
  %103 = vmatpush.msra.mxu0 %v41
  %104 = vmatpush.msra.mxu0 %v38
  %105 = vmatpush.msra.mxu0 %v35
  %106 = vmatpush.msra.mxu0 %v32
  %107 = vmatpush.msra.mxu0 %v29
  %108 = vmatpush.msra.mxu0 %v26
  %109 = vmatpush.msra.mxu0 %v23
  %110 = vmatpush.msra.mxu0 %v20
  %111 = vmatmul.f32.gmra.mxu0 %v71
  %v112 = vpop.f32.mrf.mxu0
  %v113 = vadd.f32 0.0, %v112
  %114 = vdwg.mxu0
  %115 = vmatpush.msra.mxu0 %v66
  %116 = vmatpush.msra.mxu0 %v63
  %117 = vmatpush.msra.mxu0 %v60
  %118 = vmatpush.msra.mxu0 %v57
  %119 = vmatpush.msra.mxu0 %v54
  %120 = vmatpush.msra.mxu0 %v51
  %121 = vmatpush.msra.mxu0 %v48
  %122 = vmatpush.msra.mxu0 %v45
  %123 = vmatpush.msra.mxu0 %v42
  %124 = vmatpush.msra.mxu0 %v39
  %125 = vmatpush.msra.mxu0 %v36
  %126 = vmatpush.msra.mxu0 %v33
  %127 = vmatpush.msra.mxu0 %v30
  %128 = vmatpush.msra.mxu0 %v27
  %129 = vmatpush.msra.mxu0 %v24
  %130 = vmatpush.msra.mxu0 %v21
  %131 = vmatmul.f32.gmra.mxu0 %v71
  %v132 = vpop.f32.mrf.mxu0
  %v133 = vadd.f32 0.0, %v132
  %134 = vdwg.mxu0
  %v135 = vadd.f32 %v72, %v93
  %v136 = vadd.f32 %v73, %v113
  %v137 = vxor.u32 %v135, 2147483648
  %v138 = vxor.u32 %v136, 2147483648
  %v139 = vmul.f32 %v137, 1.442695
  %v140 = vpow.pop %v139
  %v141 = vmul.f32 %v138, 1.442695
  %v142 = vpow.pop %v141
  %v143 = vadd.f32 %v140, 1.0
  %v144 = vadd.f32 %v142, 1.0
  %v145 = vrcp.pop %v143
  %v146 = vmul.f32 %v143, %v145
  %v147 = vsub.f32 1.0, %v146
  %v148 = vmul.f32 %v145, %v147
  %v149 = vadd.f32 %v145, %v148
  %vm150 = vweird.f32 %v143
  %vm151 = vweird.f32 %v145
  %vm152 = vmor %vm150, %vm151
  %v153 = vsel %vm152, %v145, %v149
  %v154 = vand.u32 2147483647, %v143
  %vm155 = vcmp.eq.f32.partialorder %v154, 8.507059e+37
  %v156 = vand.u32 %v143, 2147483648
  %v157 = vor.u32 1.1754944e-38, %v156
  %v158 = vsel %vm155, %v157, %v153
  %v159 = vmul.f32 1.0, %v158
  %v160 = vrcp.pop %v144
  %v161 = vmul.f32 %v144, %v160
  %v162 = vsub.f32 1.0, %v161
  %v163 = vmul.f32 %v160, %v162
  %v164 = vadd.f32 %v160, %v163
  %vm165 = vweird.f32 %v144
  %vm166 = vweird.f32 %v160
  %vm167 = vmor %vm165, %vm166
  %v168 = vsel %vm167, %v160, %v164
  %v169 = vand.u32 2147483647, %v144
  %vm170 = vcmp.eq.f32.partialorder %v169, 8.507059e+37
  %v171 = vand.u32 %v144, 2147483648
  %v172 = vor.u32 1.1754944e-38, %v171
  %v173 = vsel %vm170, %v172, %v168
  %v174 = vmul.f32 1.0, %v173
  %v175 = vadd.f32 %v133, %v69
  %v176 = vmul.f32 %v159, %v175
  %v177 = vadd.f32 %v74, %v176
  %v178 = vtanh.pop %v177
  %v179 = vsub.f32 %v71, %v178
  %v180 = vmul.f32 %v174, %v179
  %v181 = vadd.f32 %v178, %v180
  %s182 = scalar_lea.vmem %s0, 24
  %v183 = vld [vmem:[%s182] sm:$0xff]
  %v184 = vld [vmem:[%s182 + $0x8] sm:$0xff]
  %v185 = vld [vmem:[%s182 + $0x10] sm:$0xff]
  %186 = vmatpush.msra.mxu0 %v64
  %187 = vmatpush.msra.mxu0 %v61
  %188 = vmatpush.msra.mxu0 %v58
  %189 = vmatpush.msra.mxu0 %v55
  %190 = vmatpush.msra.mxu0 %v52
  %191 = vmatpush.msra.mxu0 %v49
  %192 = vmatpush.msra.mxu0 %v46
  %193 = vmatpush.msra.mxu0 %v43
  %194 = vmatpush.msra.mxu0 %v40
  %195 = vmatpush.msra.mxu0 %v37
  %196 = vmatpush.msra.mxu0 %v34
  %197 = vmatpush.msra.mxu0 %v31
  %198 = vmatpush.msra.mxu0 %v28
  %199 = vmatpush.msra.mxu0 %v25
  %200 = vmatpush.msra.mxu0 %v22
  %201 = vmatpush.msra.mxu0 %v19
  %202 = vmatmul.f32.gmra.mxu0 %v181
  %v203 = vpop.f32.mrf.mxu0
  %v204 = vadd.f32 0.0, %v203
  %205 = vdwg.mxu0
  %206 = vmatpush.msra.mxu0 %v65
  %207 = vmatpush.msra.mxu0 %v62
  %208 = vmatpush.msra.mxu0 %v59
  %209 = vmatpush.msra.mxu0 %v56
  %210 = vmatpush.msra.mxu0 %v53
  %211 = vmatpush.msra.mxu0 %v50
  %212 = vmatpush.msra.mxu0 %v47
  %213 = vmatpush.msra.mxu0 %v44
  %214 = vmatpush.msra.mxu0 %v41
  %215 = vmatpush.msra.mxu0 %v38
  %216 = vmatpush.msra.mxu0 %v35
  %217 = vmatpush.msra.mxu0 %v32
  %218 = vmatpush.msra.mxu0 %v29
  %219 = vmatpush.msra.mxu0 %v26
  %220 = vmatpush.msra.mxu0 %v23
  %221 = vmatpush.msra.mxu0 %v20
  %222 = vmatmul.f32.gmra.mxu0 %v181
  %v223 = vpop.f32.mrf.mxu0
  %v224 = vadd.f32 0.0, %v223
  %225 = vdwg.mxu0
  %226 = vmatpush.msra.mxu0 %v66
  %227 = vmatpush.msra.mxu0 %v63
  %228 = vmatpush.msra.mxu0 %v60
  %229 = vmatpush.msra.mxu0 %v57
  %230 = vmatpush.msra.mxu0 %v54
  %231 = vmatpush.msra.mxu0 %v51
  %232 = vmatpush.msra.mxu0 %v48
  %233 = vmatpush.msra.mxu0 %v45
  %234 = vmatpush.msra.mxu0 %v42
  %235 = vmatpush.msra.mxu0 %v39
  %236 = vmatpush.msra.mxu0 %v36
  %237 = vmatpush.msra.mxu0 %v33
  %238 = vmatpush.msra.mxu0 %v30
  %239 = vmatpush.msra.mxu0 %v27
  %240 = vmatpush.msra.mxu0 %v24
  %241 = vmatpush.msra.mxu0 %v21
  %242 = vmatmul.f32.gmra.mxu0 %v181
  %v243 = vpop.f32.mrf.mxu0
  %v244 = vadd.f32 0.0, %v243
  %245 = vdwg.mxu0
  %v246 = vadd.f32 %v183, %v204
  %v247 = vadd.f32 %v184, %v224
  %v248 = vxor.u32 %v246, 2147483648
  %v249 = vxor.u32 %v247, 2147483648
  %v250 = vmul.f32 %v248, 1.442695
  %v251 = vpow.pop %v250
  %v252 = vmul.f32 %v249, 1.442695
  %v253 = vpow.pop %v252
  %v254 = vadd.f32 %v251, 1.0
  %v255 = vadd.f32 %v253, 1.0
  %v256 = vrcp.pop %v254
  %v257 = vmul.f32 %v254, %v256
  %v258 = vsub.f32 1.0, %v257
  %v259 = vmul.f32 %v256, %v258
  %v260 = vadd.f32 %v256, %v259
  %vm261 = vweird.f32 %v254
  %vm262 = vweird.f32 %v256
  %vm263 = vmor %vm261, %vm262
  %v264 = vsel %vm263, %v256, %v260
  %v265 = vand.u32 2147483647, %v254
  %vm266 = vcmp.eq.f32.partialorder %v265, 8.507059e+37
  %v267 = vand.u32 %v254, 2147483648
  %v268 = vor.u32 1.1754944e-38, %v267
  %v269 = vsel %vm266, %v268, %v264
  %v270 = vmul.f32 1.0, %v269
  %v271 = vrcp.pop %v255
  %v272 = vmul.f32 %v255, %v271
  %v273 = vsub.f32 1.0, %v272
  %v274 = vmul.f32 %v271, %v273
  %v275 = vadd.f32 %v271, %v274
  %vm276 = vweird.f32 %v255
  %vm277 = vweird.f32 %v271
  %vm278 = vmor %vm276, %vm277
  %v279 = vsel %vm278, %v271, %v275
  %v280 = vand.u32 2147483647, %v255
  %vm281 = vcmp.eq.f32.partialorder %v280, 8.507059e+37
  %v282 = vand.u32 %v255, 2147483648
  %v283 = vor.u32 1.1754944e-38, %v282
  %v284 = vsel %vm281, %v283, %v279
  %v285 = vmul.f32 1.0, %v284
  %v286 = vadd.f32 %v244, %v69
  %v287 = vmul.f32 %v270, %v286
  %v288 = vadd.f32 %v185, %v287
  %v289 = vtanh.pop %v288
  %v290 = vsub.f32 %v181, %v289
  %v291 = vmul.f32 %v285, %v290
  %v292 = vadd.f32 %v289, %v291
  %s293 = scalar_lea.vmem %s0, 48
  %v294 = vld [vmem:[%s293] sm:$0xff]
  %v295 = vld [vmem:[%s293 + $0x8] sm:$0xff]
  %v296 = vld [vmem:[%s293 + $0x10] sm:$0xff]
  %297 = vmatpush.msra.mxu0 %v64
  %298 = vmatpush.msra.mxu0 %v61
  %299 = vmatpush.msra.mxu0 %v58
  %300 = vmatpush.msra.mxu0 %v55
  %301 = vmatpush.msra.mxu0 %v52
  %302 = vmatpush.msra.mxu0 %v49
  %303 = vmatpush.msra.mxu0 %v46
  %304 = vmatpush.msra.mxu0 %v43
  %305 = vmatpush.msra.mxu0 %v40
  %306 = vmatpush.msra.mxu0 %v37
  %307 = vmatpush.msra.mxu0 %v34
  %308 = vmatpush.msra.mxu0 %v31
  %309 = vmatpush.msra.mxu0 %v28
  %310 = vmatpush.msra.mxu0 %v25
  %311 = vmatpush.msra.mxu0 %v22
  %312 = vmatpush.msra.mxu0 %v19
  %313 = vmatmul.f32.gmra.mxu0 %v292
  %v314 = vpop.f32.mrf.mxu0
  %v315 = vadd.f32 0.0, %v314
  %316 = vdwg.mxu0
  %317 = vmatpush.msra.mxu0 %v65
  %318 = vmatpush.msra.mxu0 %v62
  %319 = vmatpush.msra.mxu0 %v59
  %320 = vmatpush.msra.mxu0 %v56
  %321 = vmatpush.msra.mxu0 %v53
  %322 = vmatpush.msra.mxu0 %v50
  %323 = vmatpush.msra.mxu0 %v47
  %324 = vmatpush.msra.mxu0 %v44
  %325 = vmatpush.msra.mxu0 %v41
  %326 = vmatpush.msra.mxu0 %v38
  %327 = vmatpush.msra.mxu0 %v35
  %328 = vmatpush.msra.mxu0 %v32
  %329 = vmatpush.msra.mxu0 %v29
  %330 = vmatpush.msra.mxu0 %v26
  %331 = vmatpush.msra.mxu0 %v23
  %332 = vmatpush.msra.mxu0 %v20
  %333 = vmatmul.f32.gmra.mxu0 %v292
  %v334 = vpop.f32.mrf.mxu0
  %v335 = vadd.f32 0.0, %v334
  %336 = vdwg.mxu0
  %337 = vmatpush.msra.mxu0 %v66
  %338 = vmatpush.msra.mxu0 %v63
  %339 = vmatpush.msra.mxu0 %v60
  %340 = vmatpush.msra.mxu0 %v57
  %341 = vmatpush.msra.mxu0 %v54
  %342 = vmatpush.msra.mxu0 %v51
  %343 = vmatpush.msra.mxu0 %v48
  %344 = vmatpush.msra.mxu0 %v45
  %345 = vmatpush.msra.mxu0 %v42
  %346 = vmatpush.msra.mxu0 %v39
  %347 = vmatpush.msra.mxu0 %v36
  %348 = vmatpush.msra.mxu0 %v33
  %349 = vmatpush.msra.mxu0 %v30
  %350 = vmatpush.msra.mxu0 %v27
  %351 = vmatpush.msra.mxu0 %v24
  %352 = vmatpush.msra.mxu0 %v21
  %353 = vmatmul.f32.gmra.mxu0 %v292
  %v354 = vpop.f32.mrf.mxu0
  %v355 = vadd.f32 0.0, %v354
  %356 = vdwg.mxu0
  %v357 = vadd.f32 %v294, %v315
  %v358 = vadd.f32 %v295, %v335
  %v359 = vxor.u32 %v357, 2147483648
  %v360 = vxor.u32 %v358, 2147483648
  %v361 = vmul.f32 %v359, 1.442695
  %v362 = vpow.pop %v361
  %v363 = vmul.f32 %v360, 1.442695
  %v364 = vpow.pop %v363
  %v365 = vadd.f32 %v362, 1.0
  %v366 = vadd.f32 %v364, 1.0
  %v367 = vrcp.pop %v365
  %v368 = vmul.f32 %v365, %v367
  %v369 = vsub.f32 1.0, %v368
  %v370 = vmul.f32 %v367, %v369
  %v371 = vadd.f32 %v367, %v370
  %vm372 = vweird.f32 %v365
  %vm373 = vweird.f32 %v367
  %vm374 = vmor %vm372, %vm373
  %v375 = vsel %vm374, %v367, %v371
  %v376 = vand.u32 2147483647, %v365
  %vm377 = vcmp.eq.f32.partialorder %v376, 8.507059e+37
  %v378 = vand.u32 %v365, 2147483648
  %v379 = vor.u32 1.1754944e-38, %v378
  %v380 = vsel %vm377, %v379, %v375
  %v381 = vmul.f32 1.0, %v380
  %v382 = vrcp.pop %v366
  %v383 = vmul.f32 %v366, %v382
  %v384 = vsub.f32 1.0, %v383
  %v385 = vmul.f32 %v382, %v384
  %v386 = vadd.f32 %v382, %v385
  %vm387 = vweird.f32 %v366
  %vm388 = vweird.f32 %v382
  %vm389 = vmor %vm387, %vm388
  %v390 = vsel %vm389, %v382, %v386
  %v391 = vand.u32 2147483647, %v366
  %vm392 = vcmp.eq.f32.partialorder %v391, 8.507059e+37
  %v393 = vand.u32 %v366, 2147483648
  %v394 = vor.u32 1.1754944e-38, %v393
  %v395 = vsel %vm392, %v394, %v390
  %v396 = vmul.f32 1.0, %v395
  %v397 = vadd.f32 %v355, %v69
  %v398 = vmul.f32 %v381, %v397
  %v399 = vadd.f32 %v296, %v398
  %v400 = vtanh.pop %v399
  %v401 = vsub.f32 %v292, %v400
  %v402 = vmul.f32 %v396, %v401
  %v403 = vadd.f32 %v400, %v402
  %s404 = scalar_lea.vmem %s0, 72
  %v405 = vld [vmem:[%s404] sm:$0xff]
  %v406 = vld [vmem:[%s404 + $0x8] sm:$0xff]
  %v407 = vld [vmem:[%s404 + $0x10] sm:$0xff]
  %408 = vmatpush.msra.mxu0 %v64
  %409 = vmatpush.msra.mxu0 %v61
  %410 = vmatpush.msra.mxu0 %v58
  %411 = vmatpush.msra.mxu0 %v55
  %412 = vmatpush.msra.mxu0 %v52
  %413 = vmatpush.msra.mxu0 %v49
  %414 = vmatpush.msra.mxu0 %v46
  %415 = vmatpush.msra.mxu0 %v43
  %416 = vmatpush.msra.mxu0 %v40
  %417 = vmatpush.msra.mxu0 %v37
  %418 = vmatpush.msra.mxu0 %v34
  %419 = vmatpush.msra.mxu0 %v31
  %420 = vmatpush.msra.mxu0 %v28
  %421 = vmatpush.msra.mxu0 %v25
  %422 = vmatpush.msra.mxu0 %v22
  %423 = vmatpush.msra.mxu0 %v19
  %424 = vmatmul.f32.gmra.mxu0 %v403
  %v425 = vpop.f32.mrf.mxu0
  %v426 = vadd.f32 0.0, %v425
  %427 = vdwg.mxu0
  %428 = vmatpush.msra.mxu0 %v65
  %429 = vmatpush.msra.mxu0 %v62
  %430 = vmatpush.msra.mxu0 %v59
  %431 = vmatpush.msra.mxu0 %v56
  %432 = vmatpush.msra.mxu0 %v53
  %433 = vmatpush.msra.mxu0 %v50
  %434 = vmatpush.msra.mxu0 %v47
  %435 = vmatpush.msra.mxu0 %v44
  %436 = vmatpush.msra.mxu0 %v41
  %437 = vmatpush.msra.mxu0 %v38
  %438 = vmatpush.msra.mxu0 %v35
  %439 = vmatpush.msra.mxu0 %v32
  %440 = vmatpush.msra.mxu0 %v29
  %441 = vmatpush.msra.mxu0 %v26
  %442 = vmatpush.msra.mxu0 %v23
  %443 = vmatpush.msra.mxu0 %v20
  %444 = vmatmul.f32.gmra.mxu0 %v403
  %v445 = vpop.f32.mrf.mxu0
  %v446 = vadd.f32 0.0, %v445
  %447 = vdwg.mxu0
  %448 = vmatpush.msra.mxu0 %v66
  %449 = vmatpush.msra.mxu0 %v63
  %450 = vmatpush.msra.mxu0 %v60
  %451 = vmatpush.msra.mxu0 %v57
  %452 = vmatpush.msra.mxu0 %v54
  %453 = vmatpush.msra.mxu0 %v51
  %454 = vmatpush.msra.mxu0 %v48
  %455 = vmatpush.msra.mxu0 %v45
  %456 = vmatpush.msra.mxu0 %v42
  %457 = vmatpush.msra.mxu0 %v39
  %458 = vmatpush.msra.mxu0 %v36
  %459 = vmatpush.msra.mxu0 %v33
  %460 = vmatpush.msra.mxu0 %v30
  %461 = vmatpush.msra.mxu0 %v27
  %462 = vmatpush.msra.mxu0 %v24
  %463 = vmatpush.msra.mxu0 %v21
  %464 = vmatmul.f32.gmra.mxu0 %v403
  %v465 = vpop.f32.mrf.mxu0
  %v466 = vadd.f32 0.0, %v465
  %467 = vdwg.mxu0
  %v468 = vadd.f32 %v405, %v426
  %v469 = vadd.f32 %v406, %v446
  %v470 = vxor.u32 %v468, 2147483648
  %v471 = vxor.u32 %v469, 2147483648
  %v472 = vmul.f32 %v470, 1.442695
  %v473 = vpow.pop %v472
  %v474 = vmul.f32 %v471, 1.442695
  %v475 = vpow.pop %v474
  %v476 = vadd.f32 %v473, 1.0
  %v477 = vadd.f32 %v475, 1.0
  %v478 = vrcp.pop %v476
  %v479 = vmul.f32 %v476, %v478
  %v480 = vsub.f32 1.0, %v479
  %v481 = vmul.f32 %v478, %v480
  %v482 = vadd.f32 %v478, %v481
  %vm483 = vweird.f32 %v476
  %vm484 = vweird.f32 %v478
  %vm485 = vmor %vm483, %vm484
  %v486 = vsel %vm485, %v478, %v482
  %v487 = vand.u32 2147483647, %v476
  %vm488 = vcmp.eq.f32.partialorder %v487, 8.507059e+37
  %v489 = vand.u32 %v476, 2147483648
  %v490 = vor.u32 1.1754944e-38, %v489
  %v491 = vsel %vm488, %v490, %v486
  %v492 = vmul.f32 1.0, %v491
  %v493 = vrcp.pop %v477
  %v494 = vmul.f32 %v477, %v493
  %v495 = vsub.f32 1.0, %v494
  %v496 = vmul.f32 %v493, %v495
  %v497 = vadd.f32 %v493, %v496
  %vm498 = vweird.f32 %v477
  %vm499 = vweird.f32 %v493
  %vm500 = vmor %vm498, %vm499
  %v501 = vsel %vm500, %v493, %v497
  %v502 = vand.u32 2147483647, %v477
  %vm503 = vcmp.eq.f32.partialorder %v502, 8.507059e+37
  %v504 = vand.u32 %v477, 2147483648
  %v505 = vor.u32 1.1754944e-38, %v504
  %v506 = vsel %vm503, %v505, %v501
  %v507 = vmul.f32 1.0, %v506
  %v508 = vadd.f32 %v466, %v69
  %v509 = vmul.f32 %v492, %v508
  %v510 = vadd.f32 %v407, %v509
  %v511 = vtanh.pop %v510
  %v512 = vsub.f32 %v403, %v511
  %v513 = vmul.f32 %v507, %v512
  %v514 = vadd.f32 %v511, %v513
  %s515 = scalar_lea.vmem %s0, 96
  %v516 = vld [vmem:[%s515] sm:$0xff]
  %v517 = vld [vmem:[%s515 + $0x8] sm:$0xff]
  %v518 = vld [vmem:[%s515 + $0x10] sm:$0xff]
  %519 = vmatpush.msra.mxu0 %v64
  %520 = vmatpush.msra.mxu0 %v61
  %521 = vmatpush.msra.mxu0 %v58
  %522 = vmatpush.msra.mxu0 %v55
  %523 = vmatpush.msra.mxu0 %v52
  %524 = vmatpush.msra.mxu0 %v49
  %525 = vmatpush.msra.mxu0 %v46
  %526 = vmatpush.msra.mxu0 %v43
  %527 = vmatpush.msra.mxu0 %v40
  %528 = vmatpush.msra.mxu0 %v37
  %529 = vmatpush.msra.mxu0 %v34
  %530 = vmatpush.msra.mxu0 %v31
  %531 = vmatpush.msra.mxu0 %v28
  %532 = vmatpush.msra.mxu0 %v25
  %533 = vmatpush.msra.mxu0 %v22
  %534 = vmatpush.msra.mxu0 %v19
  %535 = vmatmul.f32.gmra.mxu0 %v514
  %v536 = vpop.f32.mrf.mxu0
  %v537 = vadd.f32 0.0, %v536
  %538 = vdwg.mxu0
  %539 = vmatpush.msra.mxu0 %v65
  %540 = vmatpush.msra.mxu0 %v62
  %541 = vmatpush.msra.mxu0 %v59
  %542 = vmatpush.msra.mxu0 %v56
  %543 = vmatpush.msra.mxu0 %v53
  %544 = vmatpush.msra.mxu0 %v50
  %545 = vmatpush.msra.mxu0 %v47
  %546 = vmatpush.msra.mxu0 %v44
  %547 = vmatpush.msra.mxu0 %v41
  %548 = vmatpush.msra.mxu0 %v38
  %549 = vmatpush.msra.mxu0 %v35
  %550 = vmatpush.msra.mxu0 %v32
  %551 = vmatpush.msra.mxu0 %v29
  %552 = vmatpush.msra.mxu0 %v26
  %553 = vmatpush.msra.mxu0 %v23
  %554 = vmatpush.msra.mxu0 %v20
  %555 = vmatmul.f32.gmra.mxu0 %v514
  %v556 = vpop.f32.mrf.mxu0
  %v557 = vadd.f32 0.0, %v556
  %558 = vdwg.mxu0
  %559 = vmatpush.msra.mxu0 %v66
  %560 = vmatpush.msra.mxu0 %v63
  %561 = vmatpush.msra.mxu0 %v60
  %562 = vmatpush.msra.mxu0 %v57
  %563 = vmatpush.msra.mxu0 %v54
  %564 = vmatpush.msra.mxu0 %v51
  %565 = vmatpush.msra.mxu0 %v48
  %566 = vmatpush.msra.mxu0 %v45
  %567 = vmatpush.msra.mxu0 %v42
  %568 = vmatpush.msra.mxu0 %v39
  %569 = vmatpush.msra.mxu0 %v36
  %570 = vmatpush.msra.mxu0 %v33
  %571 = vmatpush.msra.mxu0 %v30
  %572 = vmatpush.msra.mxu0 %v27
  %573 = vmatpush.msra.mxu0 %v24
  %574 = vmatpush.msra.mxu0 %v21
  %575 = vmatmul.f32.gmra.mxu0 %v514
  %v576 = vpop.f32.mrf.mxu0
  %v577 = vadd.f32 0.0, %v576
  %578 = vdwg.mxu0
  %v579 = vadd.f32 %v516, %v537
  %v580 = vadd.f32 %v517, %v557
  %v581 = vxor.u32 %v579, 2147483648
  %v582 = vxor.u32 %v580, 2147483648
  %v583 = vmul.f32 %v581, 1.442695
  %v584 = vpow.pop %v583
  %v585 = vmul.f32 %v582, 1.442695
  %v586 = vpow.pop %v585
  %v587 = vadd.f32 %v584, 1.0
  %v588 = vadd.f32 %v586, 1.0
  %v589 = vrcp.pop %v587
  %v590 = vmul.f32 %v587, %v589
  %v591 = vsub.f32 1.0, %v590
  %v592 = vmul.f32 %v589, %v591
  %v593 = vadd.f32 %v589, %v592
  %vm594 = vweird.f32 %v587
  %vm595 = vweird.f32 %v589
  %vm596 = vmor %vm594, %vm595
  %v597 = vsel %vm596, %v589, %v593
  %v598 = vand.u32 2147483647, %v587
  %vm599 = vcmp.eq.f32.partialorder %v598, 8.507059e+37
  %v600 = vand.u32 %v587, 2147483648
  %v601 = vor.u32 1.1754944e-38, %v600
  %v602 = vsel %vm599, %v601, %v597
  %v603 = vmul.f32 1.0, %v602
  %v604 = vrcp.pop %v588
  %v605 = vmul.f32 %v588, %v604
  %v606 = vsub.f32 1.0, %v605
  %v607 = vmul.f32 %v604, %v606
  %v608 = vadd.f32 %v604, %v607
  %vm609 = vweird.f32 %v588
  %vm610 = vweird.f32 %v604
  %vm611 = vmor %vm609, %vm610
  %v612 = vsel %vm611, %v604, %v608
  %v613 = vand.u32 2147483647, %v588
  %vm614 = vcmp.eq.f32.partialorder %v613, 8.507059e+37
  %v615 = vand.u32 %v588, 2147483648
  %v616 = vor.u32 1.1754944e-38, %v615
  %v617 = vsel %vm614, %v616, %v612
  %v618 = vmul.f32 1.0, %v617
  %v619 = vadd.f32 %v577, %v69
  %v620 = vmul.f32 %v603, %v619
  %v621 = vadd.f32 %v518, %v620
  %v622 = vtanh.pop %v621
  %v623 = vsub.f32 %v514, %v622
  %v624 = vmul.f32 %v618, %v623
  %v625 = vadd.f32 %v622, %v624
  %s626 = scalar_lea.vmem %s0, 120
  %v627 = vld [vmem:[%s626] sm:$0xff]
  %v628 = vld [vmem:[%s626 + $0x8] sm:$0xff]
  %v629 = vld [vmem:[%s626 + $0x10] sm:$0xff]
  %630 = vmatpush.msra.mxu0 %v64
  %631 = vmatpush.msra.mxu0 %v61
  %632 = vmatpush.msra.mxu0 %v58
  %633 = vmatpush.msra.mxu0 %v55
  %634 = vmatpush.msra.mxu0 %v52
  %635 = vmatpush.msra.mxu0 %v49
  %636 = vmatpush.msra.mxu0 %v46
  %637 = vmatpush.msra.mxu0 %v43
  %638 = vmatpush.msra.mxu0 %v40
  %639 = vmatpush.msra.mxu0 %v37
  %640 = vmatpush.msra.mxu0 %v34
  %641 = vmatpush.msra.mxu0 %v31
  %642 = vmatpush.msra.mxu0 %v28
  %643 = vmatpush.msra.mxu0 %v25
  %644 = vmatpush.msra.mxu0 %v22
  %645 = vmatpush.msra.mxu0 %v19
  %646 = vmatmul.f32.gmra.mxu0 %v625
  %v647 = vpop.f32.mrf.mxu0
  %v648 = vadd.f32 0.0, %v647
  %649 = vdwg.mxu0
  %650 = vmatpush.msra.mxu0 %v65
  %651 = vmatpush.msra.mxu0 %v62
  %652 = vmatpush.msra.mxu0 %v59
  %653 = vmatpush.msra.mxu0 %v56
  %654 = vmatpush.msra.mxu0 %v53
  %655 = vmatpush.msra.mxu0 %v50
  %656 = vmatpush.msra.mxu0 %v47
  %657 = vmatpush.msra.mxu0 %v44
  %658 = vmatpush.msra.mxu0 %v41
  %659 = vmatpush.msra.mxu0 %v38
  %660 = vmatpush.msra.mxu0 %v35
  %661 = vmatpush.msra.mxu0 %v32
  %662 = vmatpush.msra.mxu0 %v29
  %663 = vmatpush.msra.mxu0 %v26
  %664 = vmatpush.msra.mxu0 %v23
  %665 = vmatpush.msra.mxu0 %v20
  %666 = vmatmul.f32.gmra.mxu0 %v625
  %v667 = vpop.f32.mrf.mxu0
  %v668 = vadd.f32 0.0, %v667
  %669 = vdwg.mxu0
  %670 = vmatpush.msra.mxu0 %v66
  %671 = vmatpush.msra.mxu0 %v63
  %672 = vmatpush.msra.mxu0 %v60
  %673 = vmatpush.msra.mxu0 %v57
  %674 = vmatpush.msra.mxu0 %v54
  %675 = vmatpush.msra.mxu0 %v51
  %676 = vmatpush.msra.mxu0 %v48
  %677 = vmatpush.msra.mxu0 %v45
  %678 = vmatpush.msra.mxu0 %v42
  %679 = vmatpush.msra.mxu0 %v39
  %680 = vmatpush.msra.mxu0 %v36
  %681 = vmatpush.msra.mxu0 %v33
  %682 = vmatpush.msra.mxu0 %v30
  %683 = vmatpush.msra.mxu0 %v27
  %684 = vmatpush.msra.mxu0 %v24
  %685 = vmatpush.msra.mxu0 %v21
  %686 = vmatmul.f32.gmra.mxu0 %v625
  %v687 = vpop.f32.mrf.mxu0
  %v688 = vadd.f32 0.0, %v687
  %689 = vdwg.mxu0
  %v690 = vadd.f32 %v627, %v648
  %v691 = vadd.f32 %v628, %v668
  %v692 = vxor.u32 %v690, 2147483648
  %v693 = vxor.u32 %v691, 2147483648
  %v694 = vmul.f32 %v692, 1.442695
  %v695 = vpow.pop %v694
  %v696 = vmul.f32 %v693, 1.442695
  %v697 = vpow.pop %v696
  %v698 = vadd.f32 %v695, 1.0
  %v699 = vadd.f32 %v697, 1.0
  %v700 = vrcp.pop %v698
  %v701 = vmul.f32 %v698, %v700
  %v702 = vsub.f32 1.0, %v701
  %v703 = vmul.f32 %v700, %v702
  %v704 = vadd.f32 %v700, %v703
  %vm705 = vweird.f32 %v698
  %vm706 = vweird.f32 %v700
  %vm707 = vmor %vm705, %vm706
  %v708 = vsel %vm707, %v700, %v704
  %v709 = vand.u32 2147483647, %v698
  %vm710 = vcmp.eq.f32.partialorder %v709, 8.507059e+37
  %v711 = vand.u32 %v698, 2147483648
  %v712 = vor.u32 1.1754944e-38, %v711
  %v713 = vsel %vm710, %v712, %v708
  %v714 = vmul.f32 1.0, %v713
  %v715 = vrcp.pop %v699
  %v716 = vmul.f32 %v699, %v715
  %v717 = vsub.f32 1.0, %v716
  %v718 = vmul.f32 %v715, %v717
  %v719 = vadd.f32 %v715, %v718
  %vm720 = vweird.f32 %v699
  %vm721 = vweird.f32 %v715
  %vm722 = vmor %vm720, %vm721
  %v723 = vsel %vm722, %v715, %v719
  %v724 = vand.u32 2147483647, %v699
  %vm725 = vcmp.eq.f32.partialorder %v724, 8.507059e+37
  %v726 = vand.u32 %v699, 2147483648
  %v727 = vor.u32 1.1754944e-38, %v726
  %v728 = vsel %vm725, %v727, %v723
  %v729 = vmul.f32 1.0, %v728
  %v730 = vadd.f32 %v688, %v69
  %v731 = vmul.f32 %v714, %v730
  %v732 = vadd.f32 %v629, %v731
  %v733 = vtanh.pop %v732
  %v734 = vsub.f32 %v625, %v733
  %v735 = vmul.f32 %v729, %v734
  %v736 = vadd.f32 %v733, %v735
  %s737 = scalar_lea.vmem %s0, 144
  %v738 = vld [vmem:[%s737] sm:$0xff]
  %v739 = vld [vmem:[%s737 + $0x8] sm:$0xff]
  %v740 = vld [vmem:[%s737 + $0x10] sm:$0xff]
  %741 = vmatpush.msra.mxu0 %v64
  %742 = vmatpush.msra.mxu0 %v61
  %743 = vmatpush.msra.mxu0 %v58
  %744 = vmatpush.msra.mxu0 %v55
  %745 = vmatpush.msra.mxu0 %v52
  %746 = vmatpush.msra.mxu0 %v49
  %747 = vmatpush.msra.mxu0 %v46
  %748 = vmatpush.msra.mxu0 %v43
  %749 = vmatpush.msra.mxu0 %v40
  %750 = vmatpush.msra.mxu0 %v37
  %751 = vmatpush.msra.mxu0 %v34
  %752 = vmatpush.msra.mxu0 %v31
  %753 = vmatpush.msra.mxu0 %v28
  %754 = vmatpush.msra.mxu0 %v25
  %755 = vmatpush.msra.mxu0 %v22
  %756 = vmatpush.msra.mxu0 %v19
  %757 = vmatmul.f32.gmra.mxu0 %v736
  %v758 = vpop.f32.mrf.mxu0
  %v759 = vadd.f32 0.0, %v758
  %760 = vdwg.mxu0
  %761 = vmatpush.msra.mxu0 %v65
  %762 = vmatpush.msra.mxu0 %v62
  %763 = vmatpush.msra.mxu0 %v59
  %764 = vmatpush.msra.mxu0 %v56
  %765 = vmatpush.msra.mxu0 %v53
  %766 = vmatpush.msra.mxu0 %v50
  %767 = vmatpush.msra.mxu0 %v47
  %768 = vmatpush.msra.mxu0 %v44
  %769 = vmatpush.msra.mxu0 %v41
  %770 = vmatpush.msra.mxu0 %v38
  %771 = vmatpush.msra.mxu0 %v35
  %772 = vmatpush.msra.mxu0 %v32
  %773 = vmatpush.msra.mxu0 %v29
  %774 = vmatpush.msra.mxu0 %v26
  %775 = vmatpush.msra.mxu0 %v23
  %776 = vmatpush.msra.mxu0 %v20
  %777 = vmatmul.f32.gmra.mxu0 %v736
  %v778 = vpop.f32.mrf.mxu0
  %v779 = vadd.f32 0.0, %v778
  %780 = vdwg.mxu0
  %781 = vmatpush.msra.mxu0 %v66
  %782 = vmatpush.msra.mxu0 %v63
  %783 = vmatpush.msra.mxu0 %v60
  %784 = vmatpush.msra.mxu0 %v57
  %785 = vmatpush.msra.mxu0 %v54
  %786 = vmatpush.msra.mxu0 %v51
  %787 = vmatpush.msra.mxu0 %v48
  %788 = vmatpush.msra.mxu0 %v45
  %789 = vmatpush.msra.mxu0 %v42
  %790 = vmatpush.msra.mxu0 %v39
  %791 = vmatpush.msra.mxu0 %v36
  %792 = vmatpush.msra.mxu0 %v33
  %793 = vmatpush.msra.mxu0 %v30
  %794 = vmatpush.msra.mxu0 %v27
  %795 = vmatpush.msra.mxu0 %v24
  %796 = vmatpush.msra.mxu0 %v21
  %797 = vmatmul.f32.gmra.mxu0 %v736
  %v798 = vpop.f32.mrf.mxu0
  %v799 = vadd.f32 0.0, %v798
  %800 = vdwg.mxu0
  %v801 = vadd.f32 %v738, %v759
  %v802 = vadd.f32 %v739, %v779
  %v803 = vxor.u32 %v801, 2147483648
  %v804 = vxor.u32 %v802, 2147483648
  %v805 = vmul.f32 %v803, 1.442695
  %v806 = vpow.pop %v805
  %v807 = vmul.f32 %v804, 1.442695
  %v808 = vpow.pop %v807
  %v809 = vadd.f32 %v806, 1.0
  %v810 = vadd.f32 %v808, 1.0
  %v811 = vrcp.pop %v809
  %v812 = vmul.f32 %v809, %v811
  %v813 = vsub.f32 1.0, %v812
  %v814 = vmul.f32 %v811, %v813
  %v815 = vadd.f32 %v811, %v814
  %vm816 = vweird.f32 %v809
  %vm817 = vweird.f32 %v811
  %vm818 = vmor %vm816, %vm817
  %v819 = vsel %vm818, %v811, %v815
  %v820 = vand.u32 2147483647, %v809
  %vm821 = vcmp.eq.f32.partialorder %v820, 8.507059e+37
  %v822 = vand.u32 %v809, 2147483648
  %v823 = vor.u32 1.1754944e-38, %v822
  %v824 = vsel %vm821, %v823, %v819
  %v825 = vmul.f32 1.0, %v824
  %v826 = vrcp.pop %v810
  %v827 = vmul.f32 %v810, %v826
  %v828 = vsub.f32 1.0, %v827
  %v829 = vmul.f32 %v826, %v828
  %v830 = vadd.f32 %v826, %v829
  %vm831 = vweird.f32 %v810
  %vm832 = vweird.f32 %v826
  %vm833 = vmor %vm831, %vm832
  %v834 = vsel %vm833, %v826, %v830
  %v835 = vand.u32 2147483647, %v810
  %vm836 = vcmp.eq.f32.partialorder %v835, 8.507059e+37
  %v837 = vand.u32 %v810, 2147483648
  %v838 = vor.u32 1.1754944e-38, %v837
  %v839 = vsel %vm836, %v838, %v834
  %v840 = vmul.f32 1.0, %v839
  %v841 = vadd.f32 %v799, %v69
  %v842 = vmul.f32 %v825, %v841
  %v843 = vadd.f32 %v740, %v842
  %v844 = vtanh.pop %v843
  %v845 = vsub.f32 %v736, %v844
  %v846 = vmul.f32 %v840, %v845
  %v847 = vadd.f32 %v844, %v846
  %s848 = scalar_lea.vmem %s0, 168
  %v849 = vld [vmem:[%s848] sm:$0xff]
  %v850 = vld [vmem:[%s848 + $0x8] sm:$0xff]
  %v851 = vld [vmem:[%s848 + $0x10] sm:$0xff]
  %852 = vmatpush.msra.mxu0 %v64
  %853 = vmatpush.msra.mxu0 %v61
  %854 = vmatpush.msra.mxu0 %v58
  %855 = vmatpush.msra.mxu0 %v55
  %856 = vmatpush.msra.mxu0 %v52
  %857 = vmatpush.msra.mxu0 %v49
  %858 = vmatpush.msra.mxu0 %v46
  %859 = vmatpush.msra.mxu0 %v43
  %860 = vmatpush.msra.mxu0 %v40
  %861 = vmatpush.msra.mxu0 %v37
  %862 = vmatpush.msra.mxu0 %v34
  %863 = vmatpush.msra.mxu0 %v31
  %864 = vmatpush.msra.mxu0 %v28
  %865 = vmatpush.msra.mxu0 %v25
  %866 = vmatpush.msra.mxu0 %v22
  %867 = vmatpush.msra.mxu0 %v19
  %868 = vmatmul.f32.gmra.mxu0 %v847
  %v869 = vpop.f32.mrf.mxu0
  %v870 = vadd.f32 0.0, %v869
  %871 = vdwg.mxu0
  %872 = vmatpush.msra.mxu0 %v65
  %873 = vmatpush.msra.mxu0 %v62
  %874 = vmatpush.msra.mxu0 %v59
  %875 = vmatpush.msra.mxu0 %v56
  %876 = vmatpush.msra.mxu0 %v53
  %877 = vmatpush.msra.mxu0 %v50
  %878 = vmatpush.msra.mxu0 %v47
  %879 = vmatpush.msra.mxu0 %v44
  %880 = vmatpush.msra.mxu0 %v41
  %881 = vmatpush.msra.mxu0 %v38
  %882 = vmatpush.msra.mxu0 %v35
  %883 = vmatpush.msra.mxu0 %v32
  %884 = vmatpush.msra.mxu0 %v29
  %885 = vmatpush.msra.mxu0 %v26
  %886 = vmatpush.msra.mxu0 %v23
  %887 = vmatpush.msra.mxu0 %v20
  %888 = vmatmul.f32.gmra.mxu0 %v847
  %v889 = vpop.f32.mrf.mxu0
  %v890 = vadd.f32 0.0, %v889
  %891 = vdwg.mxu0
  %892 = vmatpush.msra.mxu0 %v66
  %893 = vmatpush.msra.mxu0 %v63
  %894 = vmatpush.msra.mxu0 %v60
  %895 = vmatpush.msra.mxu0 %v57
  %896 = vmatpush.msra.mxu0 %v54
  %897 = vmatpush.msra.mxu0 %v51
  %898 = vmatpush.msra.mxu0 %v48
  %899 = vmatpush.msra.mxu0 %v45
  %900 = vmatpush.msra.mxu0 %v42
  %901 = vmatpush.msra.mxu0 %v39
  %902 = vmatpush.msra.mxu0 %v36
  %903 = vmatpush.msra.mxu0 %v33
  %904 = vmatpush.msra.mxu0 %v30
  %905 = vmatpush.msra.mxu0 %v27
  %906 = vmatpush.msra.mxu0 %v24
  %907 = vmatpush.msra.mxu0 %v21
  %908 = vmatmul.f32.gmra.mxu0 %v847
  %v909 = vpop.f32.mrf.mxu0
  %v910 = vadd.f32 0.0, %v909
  %911 = vdwg.mxu0
  %v912 = vadd.f32 %v849, %v870
  %v913 = vadd.f32 %v850, %v890
  %v914 = vxor.u32 %v912, 2147483648
  %v915 = vxor.u32 %v913, 2147483648
  %v916 = vmul.f32 %v914, 1.442695
  %v917 = vpow.pop %v916
  %v918 = vmul.f32 %v915, 1.442695
  %v919 = vpow.pop %v918
  %v920 = vadd.f32 %v917, 1.0
  %v921 = vadd.f32 %v919, 1.0
  %v922 = vrcp.pop %v920
  %v923 = vmul.f32 %v920, %v922
  %v924 = vsub.f32 1.0, %v923
  %v925 = vmul.f32 %v922, %v924
  %v926 = vadd.f32 %v922, %v925
  %vm927 = vweird.f32 %v920
  %vm928 = vweird.f32 %v922
  %vm929 = vmor %vm927, %vm928
  %v930 = vsel %vm929, %v922, %v926
  %v931 = vand.u32 2147483647, %v920
  %vm932 = vcmp.eq.f32.partialorder %v931, 8.507059e+37
  %v933 = vand.u32 %v920, 2147483648
  %v934 = vor.u32 1.1754944e-38, %v933
  %v935 = vsel %vm932, %v934, %v930
  %v936 = vmul.f32 1.0, %v935
  %v937 = vrcp.pop %v921
  %v938 = vmul.f32 %v921, %v937
  %v939 = vsub.f32 1.0, %v938
  %v940 = vmul.f32 %v937, %v939
  %v941 = vadd.f32 %v937, %v940
  %vm942 = vweird.f32 %v921
  %vm943 = vweird.f32 %v937
  %vm944 = vmor %vm942, %vm943
  %v945 = vsel %vm944, %v937, %v941
  %v946 = vand.u32 2147483647, %v921
  %vm947 = vcmp.eq.f32.partialorder %v946, 8.507059e+37
  %v948 = vand.u32 %v921, 2147483648
  %v949 = vor.u32 1.1754944e-38, %v948
  %v950 = vsel %vm947, %v949, %v945
  %v951 = vmul.f32 1.0, %v950
  %v952 = vadd.f32 %v910, %v69
  %v953 = vmul.f32 %v936, %v952
  %v954 = vadd.f32 %v851, %v953
  %v955 = vtanh.pop %v954
  %v956 = vsub.f32 %v847, %v955
  %v957 = vmul.f32 %v951, %v956
  %v958 = vadd.f32 %v955, %v957
  %959 = vst [vmem:[%s3] sm:$0xff] %v958
  // Predicated region
  $region18: #{gru_forward.1} parent=0 // pred_check
    _
  $region19: #{gru_forward.1} parent=0 // pred_check_branch
    %961 = sbr.rel (0) target = $region21
  $region20: #{gru_forward.1} parent=0 // pred_region
    _
  $region21: #{gru_forward.1} parent=0 // pred_fallthru
    _
  // Predicated region
  $region22: #{gru_forward.1} parent=0 // pred_check
    _
  $region23: #{gru_forward.1} parent=0 // pred_check_branch
    %963 = sbr.rel (0) target = $region25
  $region24: #{gru_forward.1} parent=0 // pred_region
    _
  $region25: #{gru_forward.1} parent=0 // pred_fallthru
    _

</llo_original>
